<compile_context>
chip_gen: v5e
topology: v5e:2x2
jax: 0.10.0
libtpu: 0.0.40
codegen_flags: <defaults>
</compile_context>

<pallas_src>
import math

import jax
import jax.numpy as jnp
from jax.experimental import pallas as pl
from jax.experimental.pallas import tpu as pltpu


# ----------------------------------------------------------------------------
# Parameter setup (deterministic; matches the nn.Module __init__ buffer `pe`,
# stored 2-D as (max_len, d_model)).  Build it directly in the model dtype so
# no per-call cast is ever needed.
# ----------------------------------------------------------------------------
def make_positional_encoding_table(d_model: int, max_len: int = 5000,
                                   dtype=jnp.float32) -> jnp.ndarray:
    assert d_model % 2 == 0, "d_model must be even (same constraint as the torch module)"
    position = jnp.arange(max_len, dtype=jnp.float32)[:, None]            # (max_len, 1)
    div_term = jnp.exp(
        jnp.arange(0, d_model, 2, dtype=jnp.float32) * (-math.log(10000.0) / d_model)
    )                                                                      # (d_model//2,)
    pe = jnp.zeros((max_len, d_model), dtype=jnp.float32)
    pe = pe.at[:, 0::2].set(jnp.sin(position * div_term))
    pe = pe.at[:, 1::2].set(jnp.cos(position * div_term))
    return pe.astype(dtype)


# ----------------------------------------------------------------------------
# Kernels
# ----------------------------------------------------------------------------
def _pe_add_kernel_3d(x_ref, pe_ref, o_ref):
    # x_ref: (ts, B, D)   pe_ref: (ts, D)  -> broadcast over batch (middle) axis
    o_ref[...] = x_ref[...] + pe_ref[...][:, None, :]


def _pe_add_kernel_2d(x_ref, pe_ref, o_ref):
    # Lane-dense view: x_ref/o_ref are (ts, B*D); replicate the (ts, D) pe tile
    # along lanes B times.  For B == 1 this is a plain add.
    d = pe_ref.shape[1]
    reps = o_ref.shape[1] // d
    pe_row = pe_ref[...]
    if reps > 1:
        pe_row = jnp.tile(pe_row, (1, reps))
    o_ref[...] = x_ref[...] + pe_row


# ----------------------------------------------------------------------------
# Tile selection: ~4 MiB of x-tile per grid step (roofline plateau), multiple
# of 8 sublanes, and small enough that the grid keeps >= `target_steps` steps
# so both v7x TensorCores get >= 4 pipelined steps each.
# ----------------------------------------------------------------------------
def _choose_seq_tile(S: int, row_bytes: int,
                     tile_budget_bytes: int = 4 * 1024 * 1024,
                     target_steps: int = 8) -> int:
    tile = max(8, (tile_budget_bytes // max(row_bytes, 1)) // 8 * 8)
    step_cap = max(8, ((pl.cdiv(S, target_steps) + 7) // 8) * 8)
    tile = min(tile, step_cap)
    tile = min(tile, ((S + 7) // 8) * 8)           # never exceed (padded) S
    return max(8, tile)


# ----------------------------------------------------------------------------
# Forward:  y = x + pe[:x.shape[0]] ;  x: (S, B, D), pe: (max_len, D)
# ----------------------------------------------------------------------------
def positional_encoding_forward(x: jnp.ndarray, pe: jnp.ndarray, *,
                                seq_tile: int | None = None,
                                donate_x: bool = False):
    S, B, D = x.shape
    assert pe.ndim == 2 and pe.shape[1] == D and pe.shape[0] >= S

    # Wrapper hygiene: the table should already be in the model dtype (built
    # that way at init).  If not, cast only the S rows the kernel will read.
    if pe.dtype != x.dtype:
        pe = pe[:S].astype(x.dtype)

    itemsize = jnp.dtype(x.dtype).itemsize
    row_bytes = B * D * itemsize
    if seq_tile is None:
        seq_tile = _choose_seq_tile(S, row_bytes)

    grid = (pl.cdiv(S, seq_tile),)

    # Scoped VMEM actually needed: double-buffered x-in + out + pe, plus
    # headroom; capped at 32 MiB so it is always safe on v7x (64 MiB physical).
    vmem_needed = (2 * (2 * seq_tile * B * D) + 2 * seq_tile * D) * itemsize
    vmem_limit = int(min(max(vmem_needed + (4 << 20), 16 << 20), 32 << 20))

    cparams = pltpu.CompilerParams(
        dimension_semantics=("parallel",),
        vmem_limit_bytes=vmem_limit,
    )
    io_alias = {0: 0} if donate_x else {}

    lane_dense = (D % 128 != 0) or (B < 8)

    if lane_dense:
        # Free reshape (trailing dims contiguous): present a lane-dense output
        # slab so stores are unmasked full-width vst.
        x2 = x.reshape(S, B * D)
        out = pl.pallas_call(
            _pe_add_kernel_2d,
            out_shape=jax.ShapeDtypeStruct((S, B * D), x.dtype),
            grid=grid,
            in_specs=[
                pl.BlockSpec((seq_tile, B * D), lambda i: (i, 0)),   # x tile
                pl.BlockSpec((seq_tile, D), lambda i: (i, 0)),       # pe rows
            ],
            out_specs=pl.BlockSpec((seq_tile, B * D), lambda i: (i, 0)),
            compiler_params=cparams,
            input_output_aliases=io_alias,
        )(x2, pe)
        return out.reshape(S, B, D)

    return pl.pallas_call(
        _pe_add_kernel_3d,
        out_shape=jax.ShapeDtypeStruct((S, B, D), x.dtype),
        grid=grid,
        in_specs=[
            pl.BlockSpec((seq_tile, B, D), lambda i: (i, 0, 0)),     # x tile
            pl.BlockSpec((seq_tile, D), lambda i: (i, 0)),           # pe rows
        ],
        out_specs=pl.BlockSpec((seq_tile, B, D), lambda i: (i, 0, 0)),
        compiler_params=cparams,
        input_output_aliases=io_alias,
    )(x, pe)


# ----------------------------------------------------------------------------
# Test
# ----------------------------------------------------------------------------
if __name__ == "__main__":
    # 1) Small module-consistent shape (seq-first): exercises the lane-dense
    #    2-D path (B < 8, D % 128 != 0).
    S1, B1, D1 = 8, 2, 32
    pe1 = make_positional_encoding_table(D1, max_len=64)
    x1 = jax.random.normal(jax.random.PRNGKey(0), (S1, B1, D1), dtype=jnp.float32)

    y1 = jax.block_until_ready(positional_encoding_forward(x1, pe1))
    ref1 = x1 + pe1[:S1][:, None, :]
    assert y1.shape == (S1, B1, D1)
    assert jnp.allclose(y1, ref1, atol=1e-6), "mismatch vs reference (lane-dense path)"

    # 2) Lane-aligned shape: exercises the 3-D path, (8,128) tiling, and a
    #    multi-step parallel grid.
    S2, B2, D2 = 64, 8, 128
    pe2 = make_positional_encoding_table(D2, max_len=128)
    x2 = jax.random.normal(jax.random.PRNGKey(1), (S2, B2, D2), dtype=jnp.float32)

    y2 = jax.block_until_ready(positional_encoding_forward(x2, pe2))
    ref2 = x2 + pe2[:S2][:, None, :]
    assert y2.shape == (S2, B2, D2)
    assert jnp.allclose(y2, ref2, atol=1e-6), "mismatch vs reference (3-D path)"

    print("KERNEL_OK")
</pallas_src>

<mosaic_0001>
module attributes {stable_mosaic.version = 11 : i64} {
  func.func @_pe_add_kernel_2d(%arg0: i32, %arg1: memref<8x64xf32, #tpu.memory_space<vmem>>, %arg2: memref<8x32xf32, #tpu.memory_space<vmem>>, %arg3: memref<8x64xf32, #tpu.memory_space<vmem>>) attributes {dimension_semantics = [#tpu.dimension_semantics<parallel>], iteration_bounds = array<i64: 1>, scalar_prefetch = 0 : i64, scratch_operands = 0 : i64, tpu.core_type = #tpu.core_type<tc>, window_params = [{transform_indices = @transform_0, window_bounds = array<i64: 8, 64>}, {transform_indices = @transform_1, window_bounds = array<i64: 8, 32>}, {transform_indices = @transform_2, window_bounds = array<i64: 8, 64>}]} {
    %c0 = arith.constant 0 : index
    %c0_0 = arith.constant 0 : index
    %0 = vector.load %arg2[%c0, %c0_0] : memref<8x32xf32, #tpu.memory_space<vmem>>, vector<8x32xf32>
    %1 = tpu.concatenate %0, %0 in 1 : vector<8x32xf32>, vector<8x32xf32> -> vector<8x64xf32>
    %c0_1 = arith.constant 0 : index
    %c0_2 = arith.constant 0 : index
    %2 = vector.load %arg1[%c0_1, %c0_2] : memref<8x64xf32, #tpu.memory_space<vmem>>, vector<8x64xf32>
    %3 = arith.addf %2, %1 : vector<8x64xf32>
    %c0_3 = arith.constant 0 : index
    %c0_4 = arith.constant 0 : index
    %4 = vector.load %arg3[%c0_3, %c0_4] : memref<8x64xf32, #tpu.memory_space<vmem>>, vector<8x64xf32>
    tpu.vector_store %arg3[%c0_3, %c0_4], %3 {strides = array<i32>} : memref<8x64xf32, #tpu.memory_space<vmem>>, vector<8x64xf32>,
    return
  }
  func.func @transform_0(%arg0: i32) -> (i32, i32) {
    %c0_i32 = arith.constant 0 : i32
    %c0_i32_0 = arith.constant 0 : i32
    return %arg0, %c0_i32 : i32, i32
  }
  func.func @transform_1(%arg0: i32) -> (i32, i32) {
    %c0_i32 = arith.constant 0 : i32
    %c0_i32_0 = arith.constant 0 : i32
    return %arg0, %c0_i32 : i32, i32
  }
  func.func @transform_2(%arg0: i32) -> (i32, i32) {
    %c0_i32 = arith.constant 0 : i32
    %c0_i32_0 = arith.constant 0 : i32
    return %arg0, %c0_i32 : i32, i32
  }
}

</mosaic_0001>

<llo_original>
// kernel: tpu_custom_call.1
$region0: #{tpu_custom_call.1}
  #allocation0 [shape = 'u32[]', space=smem, size = 0x4, offset = 0x4, fixed_abs, tag = 'smem constant byte address 0x4 - core index']
  #allocation1 [shape = 'u32[72,128]{1,0:T(1,128)}', space=vmem, size = 0x9000, scoped, tag = 'internal scratch']
  %s0 = inlined_call_operand.vmem [shape: f32[8,64], index: 0, kind: input, shape index: {}]
  %s1 = inlined_call_operand.vmem [shape: f32[64,32], index: 1, kind: input, shape index: {}]
  %s2 = inlined_call_operand.hbm [shape: f32[8,64], index: 2, kind: output, shape index: {}]
  %s3 = sld [smem:[#allocation0]]
  $region18: #{tpu_custom_call.1} parent=0
    _
  %s5 = ssub.s32 1, %s3
  %s6 = scalar_select 0, %s5, %s3
  $region1: #{tpu_custom_call.1} parent=0
    #allocation2 [shape = 'u8[4096]{0}', space=vmem, size = 0x1000, scoped, tag = 'output window, operand 0, single buffered']
    #allocation3 [shape = 's32[1]{0}', space=sflag, size = 0x4, scoped, tag = 'scoped memory for tpu_custom_call.1']
    %7 = vsyncpa [#allocation3], 0
    // Predicated region
    $region2: #{tpu_custom_call.1} parent=1 // pred_check
      _
    $region3: #{tpu_custom_call.1} parent=1 // pred_check_branch
      %9 = sbr.rel (0) target = $region5
    $region4: #{tpu_custom_call.1} parent=1 // pred_region
      _
    $region5: #{tpu_custom_call.1} parent=1 // pred_fallthru
      _
    // Predicated region
    $region6: #{tpu_custom_call.1} parent=1 // pred_check
      _
    $region7: #{tpu_custom_call.1} parent=1 // pred_check_branch
      %11 = sbr.rel (0) target = $region9
    $region8: #{tpu_custom_call.1} parent=1 // pred_region
      _
    $region9: #{tpu_custom_call.1} parent=1 // pred_fallthru
      _
    %v12 = vld [vmem:[%s1] sm:$0xff]
    %14 = vrot.lane.b32.xlu0 %v12, 32
    %v15 = vpop.permute.xlu0 %14
    %vm17 = vcmask 261120
    %v18 = vsel %vm17, %v12, %v15
    %v19 = vld [vmem:[%s0] sm:$0xff]
    %v20 = vadd.f32 %v19, %v18
    %vm21 = vcmask 523264
    %22 = vst.msk [vmem:[#allocation2] sm:$0xff] %vm21, %v20
    // Predicated region
    $region10: #{tpu_custom_call.1} parent=1 // pred_check
      _
    $region11: #{tpu_custom_call.1} parent=1 // pred_check_branch
      %24 = sbr.rel (0) target = $region13
    $region12: #{tpu_custom_call.1} parent=1 // pred_region
      %26 = vsyncadd [#allocation3], 0
      %s28 = sshll.u32 [#allocation2], 4
      %s29 = int_to_ptr.vmem [resolvable:$true] %s28
      %s30 = sshll.u32 %s2, 4
      %s31 = int_to_ptr.hbm [resolvable:$true] %s30
      %33 = dma.vmem_to_hbm [thread:$0]  %s29, 128, %s31, [#allocation3]
    $region13: #{tpu_custom_call.1} parent=1 // pred_fallthru
      _
    // Predicated region
    $region14: #{tpu_custom_call.1} parent=1 // pred_check
      _
    $region15: #{tpu_custom_call.1} parent=1 // pred_check_branch
      %35 = sbr.rel (0) target = $region17
    $region16: #{tpu_custom_call.1} parent=1 // pred_region
      %37 = dma.done [#allocation3], 128
    $region17: #{tpu_custom_call.1} parent=1 // pred_fallthru
      _
    %38 = vsyncpa [#allocation3], 1

</llo_original>
